<compile_context>
chip_gen: v7x
topology: tpu7x:2x2x1
jax: 0.10.0
libtpu: 0.0.40
codegen_flags: <defaults>
</compile_context>

<pallas_src>
import functools

import jax
import jax.numpy as jnp
import numpy as np
from jax.experimental import pallas as pl
from jax.experimental.pallas import tpu as pltpu


def _round_up(x, m):
    return (x + m - 1) // m * m


def _ap_loss_kernel(yp_col_ref, w_ref, yp_row_ref, mask_row_ref,
                    u_all_ref, u_pos_ref,
                    u_all_new_ref, u_pos_new_ref, contrib_ref,
                    *, margin, gamma, batch):
    inv_b = 1.0 / float(batch)

    yp_col = yp_col_ref[...]      # (Bj, 1)  full batch on sublanes ("j" axis)
    yp_row = yp_row_ref[...]      # (1, TM)  candidate tile on lanes ("i" axis)

    # sur[j, i] = max(margin - (y_pred[i] - y_pred[j]), 0)^2
    hinge = jnp.maximum(margin - yp_row + yp_col, 0.0)        # (Bj, TM)
    sur = hinge * hinge

    # Both reductions over j on the (otherwise idle) MXU:
    #   row 0 of w = ones (true batch only)  -> sum_j sur[j, i]
    #   row 1 of w = pos_mask                -> sum_j pos_mask[j] * sur[j, i]
    sums = jnp.dot(w_ref[...], sur,
                   preferred_element_type=jnp.float32,
                   precision=jax.lax.Precision.HIGHEST)       # (8, TM)
    sum_all = sums[0:1, :]                                    # (1, TM)
    sum_pos = sums[1:2, :]                                    # (1, TM)

    mask = mask_row_ref[...]      # (1, TM)  pos_mask for this tile's candidates

    # Moving-average update (scatter back to the u buffers happens in JAX).
    u_all_new = (1.0 - gamma) * u_all_ref[...] + (gamma * inv_b) * sum_all
    u_pos_new = (1.0 - gamma) * u_pos_ref[...] + (gamma * inv_b) * sum_pos
    u_all_new_ref[...] = u_all_new
    u_pos_new_ref[...] = u_pos_new

    # Per-candidate loss contribution (positive rows only):
    #   contrib_i = (u_pos_i * sum_all_i - u_all_i * sum_pos_i) / u_all_i^2
    safe_u = jnp.where(mask > 0.0, u_all_new, 1.0)
    inv_u = pl.reciprocal(safe_u, approx=False)               # EUP path
    contrib_ref[...] = (mask
                        * (u_pos_new * sum_all - u_all_new * sum_pos)
                        * (inv_u * inv_u))


def _pick_tile_m(batch_j):
    """Lane-tile size: keep the (Bj, TM) f32 surrogate tile around <= 2 MiB."""
    tm = 128
    while tm < 1024 and batch_j * (tm * 2) * 4 <= (2 << 20):
        if tm * 2 > _round_up(batch_j, 128):
            break
        tm *= 2
    return tm


def ap_loss_forward(y_pred, y_true, index_p, u_all, u_pos,
                    margin=1.0, gamma=0.99, tile_m=None):
    """Returns (loss, new_u_all, new_u_pos) — matches APLoss.forward plus its
    in-place buffer updates."""
    B = y_pred.shape[0]
    pos_len = u_all.shape[0]

    y_pred = y_pred.astype(jnp.float32).reshape(-1)
    pos_mask = (y_true.reshape(-1) == 1).astype(jnp.float32)

    # Gather current moving-average values per batch element (positives only).
    safe_idx = jnp.where(index_p >= 0, index_p, 0)
    u_all_rows = jnp.where(index_p >= 0, u_all[safe_idx], 0.0)
    u_pos_rows = jnp.where(index_p >= 0, u_pos[safe_idx], 0.0)

    # --- sublane ("j") side: full batch, padded to a multiple of 128 --------
    Bj = _round_up(B, 128)
    yp_col = jnp.pad(y_pred, (0, Bj - B)).reshape(Bj, 1)
    # MXU reduction weights: padded-j entries are zero, so padding never
    # contributes to either sum.
    w = jnp.zeros((8, Bj), jnp.float32).at[0, :B].set(1.0).at[1, :B].set(pos_mask)

    # --- lane ("i") side: tiled by the grid, padded to a tile multiple ------
    if tile_m is None:
        tile_m = _pick_tile_m(Bj)
    Bp = _round_up(B, tile_m)
    pad = Bp - B

    def lane(v):                       # (B,) -> (1, Bp), zero padded
        if pad:
            v = jnp.pad(v, (0, pad))
        return v.reshape(1, Bp)

    yp_lane = lane(y_pred)
    mask_lane = lane(pos_mask)         # padded lanes have mask 0 -> contrib 0
    u_all_lane = lane(u_all_rows)
    u_pos_lane = lane(u_pos_rows)

    # Explicit VMEM budget (v7x: 64 MiB physical / 32 MiB default scoped).
    sur_bytes = Bj * tile_m * 4
    io_bytes = 4 * (9 * Bj + 14 * tile_m)
    vmem_limit = int(min(max(2 * (sur_bytes + io_bytes) + (2 << 20), 8 << 20),
                         48 << 20))

    kernel = functools.partial(_ap_loss_kernel, margin=float(margin),
                               gamma=float(gamma), batch=B)

    grid = (Bp // tile_m,)
    u_all_new, u_pos_new, contrib = pl.pallas_call(
        kernel,
        grid=grid,
        in_specs=[
            pl.BlockSpec((Bj, 1), lambda i: (0, 0)),       # y_pred column (j)
            pl.BlockSpec((8, Bj), lambda i: (0, 0)),       # reduction weights
            pl.BlockSpec((1, tile_m), lambda i: (0, i)),   # y_pred lane tile
            pl.BlockSpec((1, tile_m), lambda i: (0, i)),   # pos_mask lane tile
            pl.BlockSpec((1, tile_m), lambda i: (0, i)),   # gathered u_all
            pl.BlockSpec((1, tile_m), lambda i: (0, i)),   # gathered u_pos
        ],
        out_specs=(
            pl.BlockSpec((1, tile_m), lambda i: (0, i)),   # lane-dense outputs
            pl.BlockSpec((1, tile_m), lambda i: (0, i)),
            pl.BlockSpec((1, tile_m), lambda i: (0, i)),
        ),
        out_shape=(
            jax.ShapeDtypeStruct((1, Bp), jnp.float32),
            jax.ShapeDtypeStruct((1, Bp), jnp.float32),
            jax.ShapeDtypeStruct((1, Bp), jnp.float32),
        ),
        compiler_params=pltpu.CompilerParams(
            dimension_semantics=("parallel",),
            vmem_limit_bytes=vmem_limit),
    )(yp_col, w, yp_lane, mask_lane, u_all_lane, u_pos_lane)

    # Final reduction + scalar division on a handful of per-row partials.
    n_pos = jnp.sum(pos_mask)
    loss = jnp.sum(contrib[0, :B]) / (n_pos * float(B))

    # Scatter updated moving averages back (negatives -> OOB index -> dropped).
    scatter_idx = jnp.where(index_p >= 0, index_p, pos_len)
    new_u_all = u_all.at[scatter_idx].set(u_all_new[0, :B], mode='drop')
    new_u_pos = u_pos.at[scatter_idx].set(u_pos_new[0, :B], mode='drop')
    return loss, new_u_all, new_u_pos


def _reference_numpy(y_pred, y_true, index_p, u_all, u_pos, margin, gamma):
    """Direct transcription of the PyTorch forward (numpy, float64)."""
    y_pred = np.asarray(y_pred, np.float64).reshape(-1, 1)
    y_true = np.asarray(y_true, np.float64).reshape(-1, 1)
    index_p = np.asarray(index_p).reshape(-1)
    index_p = index_p[index_p >= 0]
    u_all = np.asarray(u_all, np.float64).copy()
    u_pos = np.asarray(u_pos, np.float64).copy()

    pos_mask = (y_true == 1).flatten()
    f_ps = y_pred[pos_mask]                                    # (P, 1)
    mat_data = np.tile(y_pred.flatten(), (len(f_ps), 1))       # (P, B)
    sur = np.maximum(margin - (f_ps - mat_data), 0.0) ** 2     # (P, B)
    pos_sur = sur * pos_mask                                   # (P, B)

    u_all[index_p] = (1 - gamma) * u_all[index_p] + gamma * sur.mean(1)
    u_pos[index_p] = (1 - gamma) * u_pos[index_p] + gamma * pos_sur.mean(1)

    ua = u_all[index_p].reshape(-1, 1)
    up = u_pos[index_p].reshape(-1, 1)
    p = (up - ua * pos_mask) / ua ** 2
    return float((p * sur).mean()), u_all, u_pos


def _run_case(key, B, margin, gamma, tile_m):
    k1, k2 = jax.random.split(key)
    pos_len = B
    y_pred = jax.random.uniform(k1, (B,), dtype=jnp.float32)
    y_true = (jax.random.uniform(k2, (B,)) < 0.25).astype(jnp.float32)

    # index_p: for each positive sample, its slot in the u_* buffers; -1 else.
    cum = jnp.cumsum(y_true).astype(jnp.int32) - 1
    index_p = jnp.where(y_true == 1, cum, -1).astype(jnp.int32)

    u_all = jnp.zeros((pos_len,), jnp.float32)
    u_pos = jnp.zeros((pos_len,), jnp.float32)

    loss, new_u_all, new_u_pos = ap_loss_forward(
        y_pred, y_true, index_p, u_all, u_pos,
        margin=margin, gamma=gamma, tile_m=tile_m)
    jax.block_until_ready((loss, new_u_all, new_u_pos))

    ref_loss, ref_u_all, ref_u_pos = _reference_numpy(
        np.asarray(y_pred), np.asarray(y_true), np.asarray(index_p),
        np.asarray(u_all), np.asarray(u_pos), margin, gamma)

    assert np.allclose(float(loss), ref_loss, rtol=1e-4, atol=1e-6), \
        (B, float(loss), ref_loss)
    assert np.allclose(np.asarray(new_u_all), ref_u_all, rtol=1e-4, atol=1e-6)
    assert np.allclose(np.asarray(new_u_pos), ref_u_pos, rtol=1e-4, atol=1e-6)


if __name__ == "__main__":
    key = jax.random.PRNGKey(0)
    k_a, k_b = jax.random.split(key)

    # Single-tile case: grid=(1,).
    _run_case(k_a, B=128, margin=1.0, gamma=0.99, tile_m=None)
    # Multi-tile case: B=200 pads the lane axis to 256 -> grid=(2,); exercises
    # tiling, "parallel" semantics and the zero-padded tail.
    _run_case(k_b, B=200, margin=1.0, gamma=0.99, tile_m=128)

    print("KERNEL_OK")
</pallas_src>

<mosaic_0001>
module attributes {stable_mosaic.version = 11 : i64} {
  func.func @_ap_loss_kernel(%arg0: i32, %arg1: memref<128x1xf32, #tpu.memory_space<vmem>>, %arg2: memref<8x128xf32, #tpu.memory_space<vmem>>, %arg3: memref<1x128xf32, #tpu.memory_space<vmem>>, %arg4: memref<1x128xf32, #tpu.memory_space<vmem>>, %arg5: memref<1x128xf32, #tpu.memory_space<vmem>>, %arg6: memref<1x128xf32, #tpu.memory_space<vmem>>, %arg7: memref<1x128xf32, #tpu.memory_space<vmem>>, %arg8: memref<1x128xf32, #tpu.memory_space<vmem>>, %arg9: memref<1x128xf32, #tpu.memory_space<vmem>>) attributes {dimension_semantics = [#tpu.dimension_semantics<parallel>], iteration_bounds = array<i64: 1>, scalar_prefetch = 0 : i64, scratch_operands = 0 : i64, tpu.core_type = #tpu.core_type<tc>, window_params = [{pipeline_mode = #tpu.pipeline_mode<synchronous>, transform_indices = @transform_0, window_bounds = array<i64: 128, 1>}, {pipeline_mode = #tpu.pipeline_mode<synchronous>, transform_indices = @transform_1, window_bounds = array<i64: 8, 128>}, {transform_indices = @transform_2, window_bounds = array<i64: 1, 128>}, {transform_indices = @transform_3, window_bounds = array<i64: 1, 128>}, {transform_indices = @transform_4, window_bounds = array<i64: 1, 128>}, {transform_indices = @transform_5, window_bounds = array<i64: 1, 128>}, {transform_indices = @transform_6, window_bounds = array<i64: 1, 128>}, {transform_indices = @transform_7, window_bounds = array<i64: 1, 128>}, {transform_indices = @transform_8, window_bounds = array<i64: 1, 128>}]} {
    %c0 = arith.constant 0 : index
    %c0_0 = arith.constant 0 : index
    %0 = vector.load %arg1[%c0, %c0_0] : memref<128x1xf32, #tpu.memory_space<vmem>>, vector<128x1xf32>
    %c0_1 = arith.constant 0 : index
    %c0_2 = arith.constant 0 : index
    %1 = vector.load %arg3[%c0_1, %c0_2] : memref<1x128xf32, #tpu.memory_space<vmem>>, vector<1x128xf32>
    %cst = arith.constant 1.000000e+00 : f32
    %2 = vector.broadcast %cst : f32 to vector<1x128xf32>
    %3 = arith.subf %2, %1 : vector<1x128xf32>
    %4 = vector.broadcast %3 : vector<1x128xf32> to vector<128x128xf32>
    %5 = vector.broadcast %0 : vector<128x1xf32> to vector<128x128xf32>
    %6 = arith.addf %4, %5 : vector<128x128xf32>
    %cst_3 = arith.constant 0.000000e+00 : f32
    %7 = vector.broadcast %cst_3 : f32 to vector<128x128xf32>
    %8 = arith.maximumf %6, %7 : vector<128x128xf32>
    %9 = arith.mulf %8, %8 : vector<128x128xf32>
    %c0_4 = arith.constant 0 : index
    %c0_5 = arith.constant 0 : index
    %10 = vector.load %arg2[%c0_4, %c0_5] : memref<8x128xf32, #tpu.memory_space<vmem>>, vector<8x128xf32>
    %cst_6 = arith.constant dense<0.000000e+00> : vector<8x128xf32>
    %11 = tpu.matmul %10, %9, %cst_6 {dimension_numbers = #tpu.dot_dimension_numbers<[1], [0], [0], [1], [0, 0, 1, 1], [], []>, precision = #tpu.contract_precision<fp32>} : vector<8x128xf32>, vector<128x128xf32>, vector<8x128xf32> -> vector<8x128xf32>
    %12 = vector.extract_strided_slice %11 {offsets = [0, 0], sizes = [1, 128], strides = [1, 1]} : vector<8x128xf32> to vector<1x128xf32>
    %13 = vector.extract_strided_slice %11 {offsets = [1, 0], sizes = [1, 128], strides = [1, 1]} : vector<8x128xf32> to vector<1x128xf32>
    %c0_7 = arith.constant 0 : index
    %c0_8 = arith.constant 0 : index
    %14 = vector.load %arg4[%c0_7, %c0_8] : memref<1x128xf32, #tpu.memory_space<vmem>>, vector<1x128xf32>
    %c0_9 = arith.constant 0 : index
    %c0_10 = arith.constant 0 : index
    %15 = vector.load %arg5[%c0_9, %c0_10] : memref<1x128xf32, #tpu.memory_space<vmem>>, vector<1x128xf32>
    %cst_11 = arith.constant 0.00999999977 : f32
    %16 = vector.broadcast %cst_11 : f32 to vector<1x128xf32>
    %17 = arith.mulf %16, %15 : vector<1x128xf32>
    %cst_12 = arith.constant 0.00773437507 : f32
    %18 = vector.broadcast %cst_12 : f32 to vector<1x128xf32>
    %19 = arith.mulf %18, %12 : vector<1x128xf32>
    %20 = arith.addf %17, %19 : vector<1x128xf32>
    %c0_13 = arith.constant 0 : index
    %c0_14 = arith.constant 0 : index
    %21 = vector.load %arg6[%c0_13, %c0_14] : memref<1x128xf32, #tpu.memory_space<vmem>>, vector<1x128xf32>
    %cst_15 = arith.constant 0.00999999977 : f32
    %22 = vector.broadcast %cst_15 : f32 to vector<1x128xf32>
    %23 = arith.mulf %22, %21 : vector<1x128xf32>
    %cst_16 = arith.constant 0.00773437507 : f32
    %24 = vector.broadcast %cst_16 : f32 to vector<1x128xf32>
    %25 = arith.mulf %24, %13 : vector<1x128xf32>
    %26 = arith.addf %23, %25 : vector<1x128xf32>
    %c0_17 = arith.constant 0 : index
    %c0_18 = arith.constant 0 : index
    %27 = vector.load %arg7[%c0_17, %c0_18] : memref<1x128xf32, #tpu.memory_space<vmem>>, vector<1x128xf32>
    tpu.vector_store %arg7[%c0_17, %c0_18], %20 {strides = array<i32>} : memref<1x128xf32, #tpu.memory_space<vmem>>, vector<1x128xf32>,
    %c0_19 = arith.constant 0 : index
    %c0_20 = arith.constant 0 : index
    %28 = vector.load %arg8[%c0_19, %c0_20] : memref<1x128xf32, #tpu.memory_space<vmem>>, vector<1x128xf32>
    tpu.vector_store %arg8[%c0_19, %c0_20], %26 {strides = array<i32>} : memref<1x128xf32, #tpu.memory_space<vmem>>, vector<1x128xf32>,
    %cst_21 = arith.constant 0.000000e+00 : f32
    %29 = vector.broadcast %cst_21 : f32 to vector<1x128xf32>
    %30 = arith.cmpf ogt, %14, %29 : vector<1x128xf32>
    %cst_22 = arith.constant 1.000000e+00 : f32
    %31 = vector.broadcast %cst_22 : f32 to vector<1x128xf32>
    %32 = arith.select %30, %20, %31 : vector<1x128xi1>, vector<1x128xf32>
    %33 = tpu.reciprocal %32 : vector<1x128xf32> -> vector<1x128xf32>
    %34 = arith.mulf %26, %12 : vector<1x128xf32>
    %35 = arith.mulf %20, %13 : vector<1x128xf32>
    %36 = arith.subf %34, %35 : vector<1x128xf32>
    %37 = arith.mulf %14, %36 : vector<1x128xf32>
    %38 = arith.mulf %33, %33 : vector<1x128xf32>
    %39 = arith.mulf %37, %38 : vector<1x128xf32>
    %c0_23 = arith.constant 0 : index
    %c0_24 = arith.constant 0 : index
    %40 = vector.load %arg9[%c0_23, %c0_24] : memref<1x128xf32, #tpu.memory_space<vmem>>, vector<1x128xf32>
    tpu.vector_store %arg9[%c0_23, %c0_24], %39 {strides = array<i32>} : memref<1x128xf32, #tpu.memory_space<vmem>>, vector<1x128xf32>,
    return
  }
  func.func @transform_0(%arg0: i32) -> (i32, i32) {
    %c0_i32 = arith.constant 0 : i32
    %c0_i32_0 = arith.constant 0 : i32
    %c0_i32_1 = arith.constant 0 : i32
    return %c0_i32, %c0_i32_0 : i32, i32
  }
  func.func @transform_1(%arg0: i32) -> (i32, i32) {
    %c0_i32 = arith.constant 0 : i32
    %c0_i32_0 = arith.constant 0 : i32
    %c0_i32_1 = arith.constant 0 : i32
    return %c0_i32, %c0_i32_0 : i32, i32
  }
  func.func @transform_2(%arg0: i32) -> (i32, i32) {
    %c0_i32 = arith.constant 0 : i32
    %c0_i32_0 = arith.constant 0 : i32
    return %c0_i32, %arg0 : i32, i32
  }
  func.func @transform_3(%arg0: i32) -> (i32, i32) {
    %c0_i32 = arith.constant 0 : i32
    %c0_i32_0 = arith.constant 0 : i32
    return %c0_i32, %arg0 : i32, i32
  }
  func.func @transform_4(%arg0: i32) -> (i32, i32) {
    %c0_i32 = arith.constant 0 : i32
    %c0_i32_0 = arith.constant 0 : i32
    return %c0_i32, %arg0 : i32, i32
  }
  func.func @transform_5(%arg0: i32) -> (i32, i32) {
    %c0_i32 = arith.constant 0 : i32
    %c0_i32_0 = arith.constant 0 : i32
    return %c0_i32, %arg0 : i32, i32
  }
  func.func @transform_6(%arg0: i32) -> (i32, i32) {
    %c0_i32 = arith.constant 0 : i32
    %c0_i32_0 = arith.constant 0 : i32
    return %c0_i32, %arg0 : i32, i32
  }
  func.func @transform_7(%arg0: i32) -> (i32, i32) {
    %c0_i32 = arith.constant 0 : i32
    %c0_i32_0 = arith.constant 0 : i32
    return %c0_i32, %arg0 : i32, i32
  }
  func.func @transform_8(%arg0: i32) -> (i32, i32) {
    %c0_i32 = arith.constant 0 : i32
    %c0_i32_0 = arith.constant 0 : i32
    return %c0_i32, %arg0 : i32, i32
  }
}

</mosaic_0001>

<llo_original>
// kernel: tpu_custom_call.1
$region0: #{tpu_custom_call.1}
  #allocation0 [shape = 'u32[]', space=smem, size = 0x4, offset = 0x4, fixed_abs, tag = 'smem constant byte address 0x4 - core index']
  #allocation1 [shape = 'u32[144,128]{1,0:T(1,128)}', space=vmem, size = 0x12000, scoped, tag = 'internal scratch']
  %s0 = inlined_call_operand.vmem [shape: f32[128,1], index: 0, kind: input, shape index: {}]
  %s1 = inlined_call_operand.vmem [shape: f32[8,128], index: 1, kind: input, shape index: {}]
  %s2 = inlined_call_operand.vmem [shape: f32[1,128], index: 2, kind: input, shape index: {}]
  %s3 = inlined_call_operand.vmem [shape: f32[1,128], index: 3, kind: input, shape index: {}]
  %s4 = inlined_call_operand.vmem [shape: f32[1,128], index: 4, kind: input, shape index: {}]
  %s5 = inlined_call_operand.vmem [shape: f32[1,128], index: 5, kind: input, shape index: {}]
  %s6 = inlined_call_operand.hbm [shape: f32[1,128], index: 6, kind: output, shape index: {0}]
  %s7 = inlined_call_operand.hbm [shape: f32[1,128], index: 7, kind: output, shape index: {1}]
  %s8 = inlined_call_operand.hbm [shape: f32[1,128], index: 8, kind: output, shape index: {2}]
  %9 = xla_tuple %s6, %s7, %s8
  %s10 = sld [smem:[#allocation0]]
  $region50: #{tpu_custom_call.1} parent=0
    _
  %s12 = ssub.s32 1, %s10
  %s13 = scalar_select 0, %s12, %s10
  $region1: #{tpu_custom_call.1} parent=0
    #allocation2 [shape = 'u8[512]{0}', space=vmem, size = 0x400, scoped, tag = 'output window, operand 0, single buffered']
    #allocation3 [shape = 's32[1]{0}', space=sflag, size = 0x4, scoped, tag = 'scoped memory for tpu_custom_call.1']
    #allocation4 [shape = 'u8[512]{0}', space=vmem, size = 0x400, scoped, tag = 'output window, operand 1, single buffered']
    #allocation5 [shape = 's32[1]{0}', space=sflag, size = 0x4, scoped, tag = 'scoped memory for tpu_custom_call.1']
    #allocation6 [shape = 'u8[512]{0}', space=vmem, size = 0x400, scoped, tag = 'output window, operand 2, single buffered']
    %14 = vsyncpa [#allocation3], 0
    %15 = vsyncpa [#allocation5], 0
    // Predicated region
    $region2: #{tpu_custom_call.1} parent=1 // pred_check
      _
    $region3: #{tpu_custom_call.1} parent=1 // pred_check_branch
      %17 = sbr.rel (0) target = $region5
    $region4: #{tpu_custom_call.1} parent=1 // pred_region
      _
    $region5: #{tpu_custom_call.1} parent=1 // pred_fallthru
      _
    // Predicated region
    $region6: #{tpu_custom_call.1} parent=1 // pred_check
      _
    $region7: #{tpu_custom_call.1} parent=1 // pred_check_branch
      %19 = sbr.rel (0) target = $region9
    $region8: #{tpu_custom_call.1} parent=1 // pred_region
      _
    $region9: #{tpu_custom_call.1} parent=1 // pred_fallthru
      _
    // Predicated region
    $region10: #{tpu_custom_call.1} parent=1 // pred_check
      _
    $region11: #{tpu_custom_call.1} parent=1 // pred_check_branch
      %21 = sbr.rel (0) target = $region13
    $region12: #{tpu_custom_call.1} parent=1 // pred_region
      _
    $region13: #{tpu_custom_call.1} parent=1 // pred_fallthru
      _
    // Predicated region
    $region14: #{tpu_custom_call.1} parent=1 // pred_check
      _
    $region15: #{tpu_custom_call.1} parent=1 // pred_check_branch
      %23 = sbr.rel (0) target = $region17
    $region16: #{tpu_custom_call.1} parent=1 // pred_region
      _
    $region17: #{tpu_custom_call.1} parent=1 // pred_fallthru
      _
    // Predicated region
    $region18: #{tpu_custom_call.1} parent=1 // pred_check
      _
    $region19: #{tpu_custom_call.1} parent=1 // pred_check_branch
      %25 = sbr.rel (0) target = $region21
    $region20: #{tpu_custom_call.1} parent=1 // pred_region
      _
    $region21: #{tpu_custom_call.1} parent=1 // pred_fallthru
      _
    // Predicated region
    $region22: #{tpu_custom_call.1} parent=1 // pred_check
      _
    $region23: #{tpu_custom_call.1} parent=1 // pred_check_branch
      %27 = sbr.rel (0) target = $region25
    $region24: #{tpu_custom_call.1} parent=1 // pred_region
      _
    $region25: #{tpu_custom_call.1} parent=1 // pred_fallthru
      _
    %v28 = vld [vmem:[%s0] sm:$0xff]
    %v29 = vld [vmem:[%s0 + $0x8] sm:$0xff]
    %v30 = vld [vmem:[%s0 + $0x10] sm:$0xff]
    %v31 = vld [vmem:[%s0 + $0x18] sm:$0xff]
    %v32 = vld [vmem:[%s0 + $0x20] sm:$0xff]
    %v33 = vld [vmem:[%s0 + $0x28] sm:$0xff]
    %v34 = vld [vmem:[%s0 + $0x30] sm:$0xff]
    %v35 = vld [vmem:[%s0 + $0x38] sm:$0xff]
    %v36 = vld [vmem:[%s0 + $0x40] sm:$0xff]
    %v37 = vld [vmem:[%s0 + $0x48] sm:$0xff]
    %v38 = vld [vmem:[%s0 + $0x50] sm:$0xff]
    %v39 = vld [vmem:[%s0 + $0x58] sm:$0xff]
    %v40 = vld [vmem:[%s0 + $0x60] sm:$0xff]
    %v41 = vld [vmem:[%s0 + $0x68] sm:$0xff]
    %v42 = vld [vmem:[%s0 + $0x70] sm:$0xff]
    %v43 = vld [vmem:[%s0 + $0x78] sm:$0xff]
    %v44 = vld [vmem:[%s2] sm:$0x1]
    %v45 = vsub.f32 1.0, %v44
    %v47 = vlaneseq
    %v48 = vshrl.u32 %v47, 7
    %v49 = vsub.s32 0, %v48
    %v50 = vrot.slane %v45, %v49
    %53 = vset.pattern.permute.xlu0 0
    %54 = vperm.xlu0 %53, %v28
    %v55 = vpop.permute.xlu0 %54
    %58 = vset.pattern.permute.xlu0 0
    %59 = vperm.xlu0 %58, %v29
    %v60 = vpop.permute.xlu0 %59
    %63 = vset.pattern.permute.xlu0 0
    %64 = vperm.xlu0 %63, %v30
    %v65 = vpop.permute.xlu0 %64
    %68 = vset.pattern.permute.xlu0 0
    %69 = vperm.xlu0 %68, %v31
    %v70 = vpop.permute.xlu0 %69
    %73 = vset.pattern.permute.xlu0 0
    %74 = vperm.xlu0 %73, %v32
    %v75 = vpop.permute.xlu0 %74
    %78 = vset.pattern.permute.xlu0 0
    %79 = vperm.xlu0 %78, %v33
    %v80 = vpop.permute.xlu0 %79
    %83 = vset.pattern.permute.xlu0 0
    %84 = vperm.xlu0 %83, %v34
    %v85 = vpop.permute.xlu0 %84
    %88 = vset.pattern.permute.xlu0 0
    %89 = vperm.xlu0 %88, %v35
    %v90 = vpop.permute.xlu0 %89
    %93 = vset.pattern.permute.xlu0 0
    %94 = vperm.xlu0 %93, %v36
    %v95 = vpop.permute.xlu0 %94
    %98 = vset.pattern.permute.xlu0 0
    %99 = vperm.xlu0 %98, %v37
    %v100 = vpop.permute.xlu0 %99
    %103 = vset.pattern.permute.xlu0 0
    %104 = vperm.xlu0 %103, %v38
    %v105 = vpop.permute.xlu0 %104
    %108 = vset.pattern.permute.xlu0 0
    %109 = vperm.xlu0 %108, %v39
    %v110 = vpop.permute.xlu0 %109
    %113 = vset.pattern.permute.xlu0 0
    %114 = vperm.xlu0 %113, %v40
    %v115 = vpop.permute.xlu0 %114
    %118 = vset.pattern.permute.xlu0 0
    %119 = vperm.xlu0 %118, %v41
    %v120 = vpop.permute.xlu0 %119
    %123 = vset.pattern.permute.xlu0 0
    %124 = vperm.xlu0 %123, %v42
    %v125 = vpop.permute.xlu0 %124
    %128 = vset.pattern.permute.xlu0 0
    %129 = vperm.xlu0 %128, %v43
    %v130 = vpop.permute.xlu0 %129
    %v132 = vadd.f32 %v50, %v55
    %v133 = vadd.f32 %v50, %v60
    %v134 = vadd.f32 %v50, %v65
    %v135 = vadd.f32 %v50, %v70
    %v136 = vadd.f32 %v50, %v75
    %v137 = vadd.f32 %v50, %v80
    %v138 = vadd.f32 %v50, %v85
    %v139 = vadd.f32 %v50, %v90
    %v140 = vadd.f32 %v50, %v95
    %v141 = vadd.f32 %v50, %v100
    %v142 = vadd.f32 %v50, %v105
    %v143 = vadd.f32 %v50, %v110
    %v144 = vadd.f32 %v50, %v115
    %v145 = vadd.f32 %v50, %v120
    %v146 = vadd.f32 %v50, %v125
    %v147 = vadd.f32 %v50, %v130
    %v148 = vmax.f32 %v132, 0.0
    %v149 = vmax.f32 %v133, 0.0
    %v150 = vmax.f32 %v134, 0.0
    %v151 = vmax.f32 %v135, 0.0
    %v152 = vmax.f32 %v136, 0.0
    %v153 = vmax.f32 %v137, 0.0
    %v154 = vmax.f32 %v138, 0.0
    %v155 = vmax.f32 %v139, 0.0
    %v156 = vmax.f32 %v140, 0.0
    %v157 = vmax.f32 %v141, 0.0
    %v158 = vmax.f32 %v142, 0.0
    %v159 = vmax.f32 %v143, 0.0
    %v160 = vmax.f32 %v144, 0.0
    %v161 = vmax.f32 %v145, 0.0
    %v162 = vmax.f32 %v146, 0.0
    %v163 = vmax.f32 %v147, 0.0
    %v164 = vmul.f32 %v148, %v148
    %v165 = vmul.f32 %v149, %v149
    %v166 = vmul.f32 %v150, %v150
    %v167 = vmul.f32 %v151, %v151
    %v168 = vmul.f32 %v152, %v152
    %v169 = vmul.f32 %v153, %v153
    %v170 = vmul.f32 %v154, %v154
    %v171 = vmul.f32 %v155, %v155
    %v172 = vmul.f32 %v156, %v156
    %v173 = vmul.f32 %v157, %v157
    %v174 = vmul.f32 %v158, %v158
    %v175 = vmul.f32 %v159, %v159
    %v176 = vmul.f32 %v160, %v160
    %v177 = vmul.f32 %v161, %v161
    %v178 = vmul.f32 %v162, %v162
    %v179 = vmul.f32 %v163, %v163
    %v180 = vld [vmem:[%s1] sm:$0xff]
    %181 = vmatprep.subr.mxu0 0.0
    %v182 = vand.u32 %v164, 4294901760
    %183 = vmatpush1.msra.mxu0 %v182
    %184 = vmatprep.subr.mxu0 0.0
    %v185 = vand.u32 %v165, 4294901760
    %186 = vmatpush1.msra.mxu0 %v185
    %187 = vmatprep.subr.mxu0 0.0
    %v188 = vand.u32 %v166, 4294901760
    %189 = vmatpush1.msra.mxu0 %v188
    %190 = vmatprep.subr.mxu0 0.0
    %v191 = vand.u32 %v167, 4294901760
    %192 = vmatpush1.msra.mxu0 %v191
    %193 = vmatprep.subr.mxu0 0.0
    %v194 = vand.u32 %v168, 4294901760
    %195 = vmatpush1.msra.mxu0 %v194
    %196 = vmatprep.subr.mxu0 0.0
    %v197 = vand.u32 %v169, 4294901760
    %198 = vmatpush1.msra.mxu0 %v197
    %199 = vmatprep.subr.mxu0 0.0
    %v200 = vand.u32 %v170, 4294901760
    %201 = vmatpush1.msra.mxu0 %v200
    %202 = vmatprep.subr.mxu0 0.0
    %v203 = vand.u32 %v171, 4294901760
    %204 = vmatpush1.msra.mxu0 %v203
    %205 = vmatprep.subr.mxu0 0.0
    %v206 = vand.u32 %v172, 4294901760
    %207 = vmatpush1.msra.mxu0 %v206
    %208 = vmatprep.subr.mxu0 0.0
    %v209 = vand.u32 %v173, 4294901760
    %210 = vmatpush1.msra.mxu0 %v209
    %211 = vmatprep.subr.mxu0 0.0
    %v212 = vand.u32 %v174, 4294901760
    %213 = vmatpush1.msra.mxu0 %v212
    %214 = vmatprep.subr.mxu0 0.0
    %v215 = vand.u32 %v175, 4294901760
    %216 = vmatpush1.msra.mxu0 %v215
    %217 = vmatprep.subr.mxu0 0.0
    %v218 = vand.u32 %v176, 4294901760
    %219 = vmatpush1.msra.mxu0 %v218
    %220 = vmatprep.subr.mxu0 0.0
    %v221 = vand.u32 %v177, 4294901760
    %222 = vmatpush1.msra.mxu0 %v221
    %223 = vmatprep.subr.mxu0 0.0
    %v224 = vand.u32 %v178, 4294901760
    %225 = vmatpush1.msra.mxu0 %v224
    %226 = vmatprep.subr.mxu0 0.0
    %v227 = vand.u32 %v179, 4294901760
    %228 = vmatpush1.msra.mxu0 %v227
    %229 = vmatprep.subr.mxu0 0.0
    %230 = vmatpush1.msra.mxu0 0.0
    %231 = vmatprep.subr.mxu0 0.0
    %232 = vmatpush1.msra.mxu0 0.0
    %233 = vmatprep.subr.mxu0 0.0
    %234 = vmatpush1.msra.mxu0 0.0
    %235 = vmatprep.subr.mxu0 0.0
    %236 = vmatpush1.msra.mxu0 0.0
    %237 = vmatprep.subr.mxu0 0.0
    %238 = vmatpush1.msra.mxu0 0.0
    %239 = vmatprep.subr.mxu0 0.0
    %240 = vmatpush1.msra.mxu0 0.0
    %241 = vmatprep.subr.mxu0 0.0
    %242 = vmatpush1.msra.mxu0 0.0
    %243 = vmatprep.subr.mxu0 0.0
    %244 = vmatpush1.msra.mxu0 0.0
    %245 = vmatprep.subr.mxu0 0.0
    %246 = vmatpush1.msra.mxu0 0.0
    %247 = vmatprep.subr.mxu0 0.0
    %248 = vmatpush1.msra.mxu0 0.0
    %249 = vmatprep.subr.mxu0 0.0
    %250 = vmatpush1.msra.mxu0 0.0
    %251 = vmatprep.subr.mxu0 0.0
    %252 = vmatpush1.msra.mxu0 0.0
    %253 = vmatprep.subr.mxu0 0.0
    %254 = vmatpush1.msra.mxu0 0.0
    %255 = vmatprep.subr.mxu0 0.0
    %256 = vmatpush1.msra.mxu0 0.0
    %257 = vmatprep.subr.mxu0 0.0
    %258 = vmatpush1.msra.mxu0 0.0
    %259 = vmatprep.subr.mxu0 0.0
    %260 = vmatpush1.msra.mxu0 0.0
    %261 = vmatprep.mubr.f32.mxu0 0.0
    %v262 = vand.u32 %v180, 4294901760
    %v263 = vsub.f32 %v180, %v262
    %v264 = vand.u32 %v263, 4294901760
    %v265 = vsub.f32 %v263, %v264
    %v266 = vand.u32 %v265, 4294901760
    %267 = vmatmul.mubr.f32.gmra.mrb[0].mxu0 %v266
    %v268 = vpop.f32.mrb[0].mxu0
    %v269 = vadd.f32 0.0, %v268
    %v270 = vpop.f32.mrb[0].mxu0
    %271 = vdwg.mxu0
    %272 = vmatprep.subr.mxu0 0.0
    %v273 = vand.u32 %v164, 4294901760
    %v274 = vsub.f32 %v164, %v273
    %v275 = vand.u32 %v274, 4294901760
    %v276 = vsub.f32 %v274, %v275
    %v277 = vand.u32 %v276, 4294901760
    %278 = vmatpush1.msra.mxu0 %v277
    %279 = vmatprep.subr.mxu0 0.0
    %v280 = vand.u32 %v165, 4294901760
    %v281 = vsub.f32 %v165, %v280
    %v282 = vand.u32 %v281, 4294901760
    %v283 = vsub.f32 %v281, %v282
    %v284 = vand.u32 %v283, 4294901760
    %285 = vmatpush1.msra.mxu0 %v284
    %286 = vmatprep.subr.mxu0 0.0
    %v287 = vand.u32 %v166, 4294901760
    %v288 = vsub.f32 %v166, %v287
    %v289 = vand.u32 %v288, 4294901760
    %v290 = vsub.f32 %v288, %v289
    %v291 = vand.u32 %v290, 4294901760
    %292 = vmatpush1.msra.mxu0 %v291
    %293 = vmatprep.subr.mxu0 0.0
    %v294 = vand.u32 %v167, 4294901760
    %v295 = vsub.f32 %v167, %v294
    %v296 = vand.u32 %v295, 4294901760
    %v297 = vsub.f32 %v295, %v296
    %v298 = vand.u32 %v297, 4294901760
    %299 = vmatpush1.msra.mxu0 %v298
    %300 = vmatprep.subr.mxu0 0.0
    %v301 = vand.u32 %v168, 4294901760
    %v302 = vsub.f32 %v168, %v301
    %v303 = vand.u32 %v302, 4294901760
    %v304 = vsub.f32 %v302, %v303
    %v305 = vand.u32 %v304, 4294901760
    %306 = vmatpush1.msra.mxu0 %v305
    %307 = vmatprep.subr.mxu0 0.0
    %v308 = vand.u32 %v169, 4294901760
    %v309 = vsub.f32 %v169, %v308
    %v310 = vand.u32 %v309, 4294901760
    %v311 = vsub.f32 %v309, %v310
    %v312 = vand.u32 %v311, 4294901760
    %313 = vmatpush1.msra.mxu0 %v312
    %314 = vmatprep.subr.mxu0 0.0
    %v315 = vand.u32 %v170, 4294901760
    %v316 = vsub.f32 %v170, %v315
    %v317 = vand.u32 %v316, 4294901760
    %v318 = vsub.f32 %v316, %v317
    %v319 = vand.u32 %v318, 4294901760
    %320 = vmatpush1.msra.mxu0 %v319
    %321 = vmatprep.subr.mxu0 0.0
    %v322 = vand.u32 %v171, 4294901760
    %v323 = vsub.f32 %v171, %v322
    %v324 = vand.u32 %v323, 4294901760
    %v325 = vsub.f32 %v323, %v324
    %v326 = vand.u32 %v325, 4294901760
    %327 = vmatpush1.msra.mxu0 %v326
    %328 = vmatprep.subr.mxu0 0.0
    %v329 = vand.u32 %v172, 4294901760
    %v330 = vsub.f32 %v172, %v329
    %v331 = vand.u32 %v330, 4294901760
    %v332 = vsub.f32 %v330, %v331
    %v333 = vand.u32 %v332, 4294901760
    %334 = vmatpush1.msra.mxu0 %v333
    %335 = vmatprep.subr.mxu0 0.0
    %v336 = vand.u32 %v173, 4294901760
    %v337 = vsub.f32 %v173, %v336
    %v338 = vand.u32 %v337, 4294901760
    %v339 = vsub.f32 %v337, %v338
    %v340 = vand.u32 %v339, 4294901760
    %341 = vmatpush1.msra.mxu0 %v340
    %342 = vmatprep.subr.mxu0 0.0
    %v343 = vand.u32 %v174, 4294901760
    %v344 = vsub.f32 %v174, %v343
    %v345 = vand.u32 %v344, 4294901760
    %v346 = vsub.f32 %v344, %v345
    %v347 = vand.u32 %v346, 4294901760
    %348 = vmatpush1.msra.mxu0 %v347
    %349 = vmatprep.subr.mxu0 0.0
    %v350 = vand.u32 %v175, 4294901760
    %v351 = vsub.f32 %v175, %v350
    %v352 = vand.u32 %v351, 4294901760
    %v353 = vsub.f32 %v351, %v352
    %v354 = vand.u32 %v353, 4294901760
    %355 = vmatpush1.msra.mxu0 %v354
    %356 = vmatprep.subr.mxu0 0.0
    %v357 = vand.u32 %v176, 4294901760
    %v358 = vsub.f32 %v176, %v357
    %v359 = vand.u32 %v358, 4294901760
    %v360 = vsub.f32 %v358, %v359
    %v361 = vand.u32 %v360, 4294901760
    %362 = vmatpush1.msra.mxu0 %v361
    %363 = vmatprep.subr.mxu0 0.0
    %v364 = vand.u32 %v177, 4294901760
    %v365 = vsub.f32 %v177, %v364
    %v366 = vand.u32 %v365, 4294901760
    %v367 = vsub.f32 %v365, %v366
    %v368 = vand.u32 %v367, 4294901760
    %369 = vmatpush1.msra.mxu0 %v368
    %370 = vmatprep.subr.mxu0 0.0
    %v371 = vand.u32 %v178, 4294901760
    %v372 = vsub.f32 %v178, %v371
    %v373 = vand.u32 %v372, 4294901760
    %v374 = vsub.f32 %v372, %v373
    %v375 = vand.u32 %v374, 4294901760
    %376 = vmatpush1.msra.mxu0 %v375
    %377 = vmatprep.subr.mxu0 0.0
    %v378 = vand.u32 %v179, 4294901760
    %v379 = vsub.f32 %v179, %v378
    %v380 = vand.u32 %v379, 4294901760
    %v381 = vsub.f32 %v379, %v380
    %v382 = vand.u32 %v381, 4294901760
    %383 = vmatpush1.msra.mxu0 %v382
    %384 = vmatprep.subr.mxu0 0.0
    %385 = vmatpush1.msra.mxu0 0.0
    %386 = vmatprep.subr.mxu0 0.0
    %387 = vmatpush1.msra.mxu0 0.0
    %388 = vmatprep.subr.mxu0 0.0
    %389 = vmatpush1.msra.mxu0 0.0
    %390 = vmatprep.subr.mxu0 0.0
    %391 = vmatpush1.msra.mxu0 0.0
    %392 = vmatprep.subr.mxu0 0.0
    %393 = vmatpush1.msra.mxu0 0.0
    %394 = vmatprep.subr.mxu0 0.0
    %395 = vmatpush1.msra.mxu0 0.0
    %396 = vmatprep.subr.mxu0 0.0
    %397 = vmatpush1.msra.mxu0 0.0
    %398 = vmatprep.subr.mxu0 0.0
    %399 = vmatpush1.msra.mxu0 0.0
    %400 = vmatprep.subr.mxu0 0.0
    %401 = vmatpush1.msra.mxu0 0.0
    %402 = vmatprep.subr.mxu0 0.0
    %403 = vmatpush1.msra.mxu0 0.0
    %404 = vmatprep.subr.mxu0 0.0
    %405 = vmatpush1.msra.mxu0 0.0
    %406 = vmatprep.subr.mxu0 0.0
    %407 = vmatpush1.msra.mxu0 0.0
    %408 = vmatprep.subr.mxu0 0.0
    %409 = vmatpush1.msra.mxu0 0.0
    %410 = vmatprep.subr.mxu0 0.0
    %411 = vmatpush1.msra.mxu0 0.0
    %412 = vmatprep.subr.mxu0 0.0
    %413 = vmatpush1.msra.mxu0 0.0
    %414 = vmatprep.subr.mxu0 0.0
    %415 = vmatpush1.msra.mxu0 0.0
    %416 = vmatprep.mubr.f32.mxu0 0.0
    %v417 = vand.u32 %v180, 4294901760
    %418 = vmatmul.mubr.f32.gmra.mrb[0].mxu0 %v417
    %v419 = vpop.f32.mrb[0].mxu0
    %v420 = vadd.f32 %v269, %v419
    %v421 = vpop.f32.mrb[0].mxu0
    %422 = vdwg.mxu0
    %423 = vmatprep.subr.mxu0 0.0
    %v424 = vand.u32 %v164, 4294901760
    %v425 = vsub.f32 %v164, %v424
    %426 = vmatpush1.msra.mxu0 %v425
    %427 = vmatprep.subr.mxu0 0.0
    %v428 = vand.u32 %v165, 4294901760
    %v429 = vsub.f32 %v165, %v428
    %430 = vmatpush1.msra.mxu0 %v429
    %431 = vmatprep.subr.mxu0 0.0
    %v432 = vand.u32 %v166, 4294901760
    %v433 = vsub.f32 %v166, %v432
    %434 = vmatpush1.msra.mxu0 %v433
    %435 = vmatprep.subr.mxu0 0.0
    %v436 = vand.u32 %v167, 4294901760
    %v437 = vsub.f32 %v167, %v436
    %438 = vmatpush1.msra.mxu0 %v437
    %439 = vmatprep.subr.mxu0 0.0
    %v440 = vand.u32 %v168, 4294901760
    %v441 = vsub.f32 %v168, %v440
    %442 = vmatpush1.msra.mxu0 %v441
    %443 = vmatprep.subr.mxu0 0.0
    %v444 = vand.u32 %v169, 4294901760
    %v445 = vsub.f32 %v169, %v444
    %446 = vmatpush1.msra.mxu0 %v445
    %447 = vmatprep.subr.mxu0 0.0
    %v448 = vand.u32 %v170, 4294901760
    %v449 = vsub.f32 %v170, %v448
    %450 = vmatpush1.msra.mxu0 %v449
    %451 = vmatprep.subr.mxu0 0.0
    %v452 = vand.u32 %v171, 4294901760
    %v453 = vsub.f32 %v171, %v452
    %454 = vmatpush1.msra.mxu0 %v453
    %455 = vmatprep.subr.mxu0 0.0
    %v456 = vand.u32 %v172, 4294901760
    %v457 = vsub.f32 %v172, %v456
    %458 = vmatpush1.msra.mxu0 %v457
    %459 = vmatprep.subr.mxu0 0.0
    %v460 = vand.u32 %v173, 4294901760
    %v461 = vsub.f32 %v173, %v460
    %462 = vmatpush1.msra.mxu0 %v461
    %463 = vmatprep.subr.mxu0 0.0
    %v464 = vand.u32 %v174, 4294901760
    %v465 = vsub.f32 %v174, %v464
    %466 = vmatpush1.msra.mxu0 %v465
    %467 = vmatprep.subr.mxu0 0.0
    %v468 = vand.u32 %v175, 4294901760
    %v469 = vsub.f32 %v175, %v468
    %470 = vmatpush1.msra.mxu0 %v469
    %471 = vmatprep.subr.mxu0 0.0
    %v472 = vand.u32 %v176, 4294901760
    %v473 = vsub.f32 %v176, %v472
    %474 = vmatpush1.msra.mxu0 %v473
    %475 = vmatprep.subr.mxu0 0.0
    %v476 = vand.u32 %v177, 4294901760
    %v477 = vsub.f32 %v177, %v476
    %478 = vmatpush1.msra.mxu0 %v477
    %479 = vmatprep.subr.mxu0 0.0
    %v480 = vand.u32 %v178, 4294901760
    %v481 = vsub.f32 %v178, %v480
    %482 = vmatpush1.msra.mxu0 %v481
    %483 = vmatprep.subr.mxu0 0.0
    %v484 = vand.u32 %v179, 4294901760
    %v485 = vsub.f32 %v179, %v484
    %486 = vmatpush1.msra.mxu0 %v485
    %487 = vmatprep.subr.mxu0 0.0
    %488 = vmatpush1.msra.mxu0 0.0
    %489 = vmatprep.subr.mxu0 0.0
    %490 = vmatpush1.msra.mxu0 0.0
    %491 = vmatprep.subr.mxu0 0.0
    %492 = vmatpush1.msra.mxu0 0.0
    %493 = vmatprep.subr.mxu0 0.0
    %494 = vmatpush1.msra.mxu0 0.0
    %495 = vmatprep.subr.mxu0 0.0
    %496 = vmatpush1.msra.mxu0 0.0
    %497 = vmatprep.subr.mxu0 0.0
    %498 = vmatpush1.msra.mxu0 0.0
    %499 = vmatprep.subr.mxu0 0.0
    %500 = vmatpush1.msra.mxu0 0.0
    %501 = vmatprep.subr.mxu0 0.0
    %502 = vmatpush1.msra.mxu0 0.0
    %503 = vmatprep.subr.mxu0 0.0
    %504 = vmatpush1.msra.mxu0 0.0
    %505 = vmatprep.subr.mxu0 0.0
    %506 = vmatpush1.msra.mxu0 0.0
    %507 = vmatprep.subr.mxu0 0.0
    %508 = vmatpush1.msra.mxu0 0.0
    %509 = vmatprep.subr.mxu0 0.0
    %510 = vmatpush1.msra.mxu0 0.0
    %511 = vmatprep.subr.mxu0 0.0
    %512 = vmatpush1.msra.mxu0 0.0
    %513 = vmatprep.subr.mxu0 0.0
    %514 = vmatpush1.msra.mxu0 0.0
    %515 = vmatprep.subr.mxu0 0.0
    %516 = vmatpush1.msra.mxu0 0.0
    %517 = vmatprep.subr.mxu0 0.0
    %518 = vmatpush1.msra.mxu0 0.0
    %519 = vmatprep.mubr.f32.mxu0 0.0
    %v520 = vand.u32 %v180, 4294901760
    %v521 = vsub.f32 %v180, %v520
    %522 = vmatmul.mubr.f32.gmra.mrb[0].mxu0 %v521
    %v523 = vpop.f32.mrb[0].mxu0
    %v524 = vadd.f32 %v420, %v523
    %v525 = vpop.f32.mrb[0].mxu0
    %526 = vdwg.mxu0
    %527 = vmatprep.subr.mxu0 0.0
    %v528 = vand.u32 %v164, 4294901760
    %529 = vmatpush1.msra.mxu0 %v528
    %530 = vmatprep.subr.mxu0 0.0
    %v531 = vand.u32 %v165, 4294901760
    %532 = vmatpush1.msra.mxu0 %v531
    %533 = vmatprep.subr.mxu0 0.0
    %v534 = vand.u32 %v166, 4294901760
    %535 = vmatpush1.msra.mxu0 %v534
    %536 = vmatprep.subr.mxu0 0.0
    %v537 = vand.u32 %v167, 4294901760
    %538 = vmatpush1.msra.mxu0 %v537
    %539 = vmatprep.subr.mxu0 0.0
    %v540 = vand.u32 %v168, 4294901760
    %541 = vmatpush1.msra.mxu0 %v540
    %542 = vmatprep.subr.mxu0 0.0
    %v543 = vand.u32 %v169, 4294901760
    %544 = vmatpush1.msra.mxu0 %v543
    %545 = vmatprep.subr.mxu0 0.0
    %v546 = vand.u32 %v170, 4294901760
    %547 = vmatpush1.msra.mxu0 %v546
    %548 = vmatprep.subr.mxu0 0.0
    %v549 = vand.u32 %v171, 4294901760
    %550 = vmatpush1.msra.mxu0 %v549
    %551 = vmatprep.subr.mxu0 0.0
    %v552 = vand.u32 %v172, 4294901760
    %553 = vmatpush1.msra.mxu0 %v552
    %554 = vmatprep.subr.mxu0 0.0
    %v555 = vand.u32 %v173, 4294901760
    %556 = vmatpush1.msra.mxu0 %v555
    %557 = vmatprep.subr.mxu0 0.0
    %v558 = vand.u32 %v174, 4294901760
    %559 = vmatpush1.msra.mxu0 %v558
    %560 = vmatprep.subr.mxu0 0.0
    %v561 = vand.u32 %v175, 4294901760
    %562 = vmatpush1.msra.mxu0 %v561
    %563 = vmatprep.subr.mxu0 0.0
    %v564 = vand.u32 %v176, 4294901760
    %565 = vmatpush1.msra.mxu0 %v564
    %566 = vmatprep.subr.mxu0 0.0
    %v567 = vand.u32 %v177, 4294901760
    %568 = vmatpush1.msra.mxu0 %v567
    %569 = vmatprep.subr.mxu0 0.0
    %v570 = vand.u32 %v178, 4294901760
    %571 = vmatpush1.msra.mxu0 %v570
    %572 = vmatprep.subr.mxu0 0.0
    %v573 = vand.u32 %v179, 4294901760
    %574 = vmatpush1.msra.mxu0 %v573
    %575 = vmatprep.subr.mxu0 0.0
    %576 = vmatpush1.msra.mxu0 0.0
    %577 = vmatprep.subr.mxu0 0.0
    %578 = vmatpush1.msra.mxu0 0.0
    %579 = vmatprep.subr.mxu0 0.0
    %580 = vmatpush1.msra.mxu0 0.0
    %581 = vmatprep.subr.mxu0 0.0
    %582 = vmatpush1.msra.mxu0 0.0
    %583 = vmatprep.subr.mxu0 0.0
    %584 = vmatpush1.msra.mxu0 0.0
    %585 = vmatprep.subr.mxu0 0.0
    %586 = vmatpush1.msra.mxu0 0.0
    %587 = vmatprep.subr.mxu0 0.0
    %588 = vmatpush1.msra.mxu0 0.0
    %589 = vmatprep.subr.mxu0 0.0
    %590 = vmatpush1.msra.mxu0 0.0
    %591 = vmatprep.subr.mxu0 0.0
    %592 = vmatpush1.msra.mxu0 0.0
    %593 = vmatprep.subr.mxu0 0.0
    %594 = vmatpush1.msra.mxu0 0.0
    %595 = vmatprep.subr.mxu0 0.0
    %596 = vmatpush1.msra.mxu0 0.0
    %597 = vmatprep.subr.mxu0 0.0
    %598 = vmatpush1.msra.mxu0 0.0
    %599 = vmatprep.subr.mxu0 0.0
    %600 = vmatpush1.msra.mxu0 0.0
    %601 = vmatprep.subr.mxu0 0.0
    %602 = vmatpush1.msra.mxu0 0.0
    %603 = vmatprep.subr.mxu0 0.0
    %604 = vmatpush1.msra.mxu0 0.0
    %605 = vmatprep.subr.mxu0 0.0
    %606 = vmatpush1.msra.mxu0 0.0
    %607 = vmatprep.mubr.f32.mxu0 0.0
    %v608 = vand.u32 %v180, 4294901760
    %v609 = vsub.f32 %v180, %v608
    %v610 = vand.u32 %v609, 4294901760
    %611 = vmatmul.mubr.f32.gmra.mrb[0].mxu0 %v610
    %v612 = vpop.f32.mrb[0].mxu0
    %v613 = vadd.f32 %v524, %v612
    %v614 = vpop.f32.mrb[0].mxu0
    %615 = vdwg.mxu0
    %616 = vmatprep.subr.mxu0 0.0
    %v617 = vand.u32 %v164, 4294901760
    %v618 = vsub.f32 %v164, %v617
    %v619 = vand.u32 %v618, 4294901760
    %620 = vmatpush1.msra.mxu0 %v619
    %621 = vmatprep.subr.mxu0 0.0
    %v622 = vand.u32 %v165, 4294901760
    %v623 = vsub.f32 %v165, %v622
    %v624 = vand.u32 %v623, 4294901760
    %625 = vmatpush1.msra.mxu0 %v624
    %626 = vmatprep.subr.mxu0 0.0
    %v627 = vand.u32 %v166, 4294901760
    %v628 = vsub.f32 %v166, %v627
    %v629 = vand.u32 %v628, 4294901760
    %630 = vmatpush1.msra.mxu0 %v629
    %631 = vmatprep.subr.mxu0 0.0
    %v632 = vand.u32 %v167, 4294901760
    %v633 = vsub.f32 %v167, %v632
    %v634 = vand.u32 %v633, 4294901760
    %635 = vmatpush1.msra.mxu0 %v634
    %636 = vmatprep.subr.mxu0 0.0
    %v637 = vand.u32 %v168, 4294901760
    %v638 = vsub.f32 %v168, %v637
    %v639 = vand.u32 %v638, 4294901760
    %640 = vmatpush1.msra.mxu0 %v639
    %641 = vmatprep.subr.mxu0 0.0
    %v642 = vand.u32 %v169, 4294901760
    %v643 = vsub.f32 %v169, %v642
    %v644 = vand.u32 %v643, 4294901760
    %645 = vmatpush1.msra.mxu0 %v644
    %646 = vmatprep.subr.mxu0 0.0
    %v647 = vand.u32 %v170, 4294901760
    %v648 = vsub.f32 %v170, %v647
    %v649 = vand.u32 %v648, 4294901760
    %650 = vmatpush1.msra.mxu0 %v649
    %651 = vmatprep.subr.mxu0 0.0
    %v652 = vand.u32 %v171, 4294901760
    %v653 = vsub.f32 %v171, %v652
    %v654 = vand.u32 %v653, 4294901760
    %655 = vmatpush1.msra.mxu0 %v654
    %656 = vmatprep.subr.mxu0 0.0
    %v657 = vand.u32 %v172, 4294901760
    %v658 = vsub.f32 %v172, %v657
    %v659 = vand.u32 %v658, 4294901760
    %660 = vmatpush1.msra.mxu0 %v659
    %661 = vmatprep.subr.mxu0 0.0
    %v662 = vand.u32 %v173, 4294901760
    %v663 = vsub.f32 %v173, %v662
    %v664 = vand.u32 %v663, 4294901760
    %665 = vmatpush1.msra.mxu0 %v664
    %666 = vmatprep.subr.mxu0 0.0
    %v667 = vand.u32 %v174, 4294901760
    %v668 = vsub.f32 %v174, %v667
    %v669 = vand.u32 %v668, 4294901760
    %670 = vmatpush1.msra.mxu0 %v669
    %671 = vmatprep.subr.mxu0 0.0
    %v672 = vand.u32 %v175, 4294901760
    %v673 = vsub.f32 %v175, %v672
    %v674 = vand.u32 %v673, 4294901760
    %675 = vmatpush1.msra.mxu0 %v674
    %676 = vmatprep.subr.mxu0 0.0
    %v677 = vand.u32 %v176, 4294901760
    %v678 = vsub.f32 %v176, %v677
    %v679 = vand.u32 %v678, 4294901760
    %680 = vmatpush1.msra.mxu0 %v679
    %681 = vmatprep.subr.mxu0 0.0
    %v682 = vand.u32 %v177, 4294901760
    %v683 = vsub.f32 %v177, %v682
    %v684 = vand.u32 %v683, 4294901760
    %685 = vmatpush1.msra.mxu0 %v684
    %686 = vmatprep.subr.mxu0 0.0
    %v687 = vand.u32 %v178, 4294901760
    %v688 = vsub.f32 %v178, %v687
    %v689 = vand.u32 %v688, 4294901760
    %690 = vmatpush1.msra.mxu0 %v689
    %691 = vmatprep.subr.mxu0 0.0
    %v692 = vand.u32 %v179, 4294901760
    %v693 = vsub.f32 %v179, %v692
    %v694 = vand.u32 %v693, 4294901760
    %695 = vmatpush1.msra.mxu0 %v694
    %696 = vmatprep.subr.mxu0 0.0
    %697 = vmatpush1.msra.mxu0 0.0
    %698 = vmatprep.subr.mxu0 0.0
    %699 = vmatpush1.msra.mxu0 0.0
    %700 = vmatprep.subr.mxu0 0.0
    %701 = vmatpush1.msra.mxu0 0.0
    %702 = vmatprep.subr.mxu0 0.0
    %703 = vmatpush1.msra.mxu0 0.0
    %704 = vmatprep.subr.mxu0 0.0
    %705 = vmatpush1.msra.mxu0 0.0
    %706 = vmatprep.subr.mxu0 0.0
    %707 = vmatpush1.msra.mxu0 0.0
    %708 = vmatprep.subr.mxu0 0.0
    %709 = vmatpush1.msra.mxu0 0.0
    %710 = vmatprep.subr.mxu0 0.0
    %711 = vmatpush1.msra.mxu0 0.0
    %712 = vmatprep.subr.mxu0 0.0
    %713 = vmatpush1.msra.mxu0 0.0
    %714 = vmatprep.subr.mxu0 0.0
    %715 = vmatpush1.msra.mxu0 0.0
    %716 = vmatprep.subr.mxu0 0.0
    %717 = vmatpush1.msra.mxu0 0.0
    %718 = vmatprep.subr.mxu0 0.0
    %719 = vmatpush1.msra.mxu0 0.0
    %720 = vmatprep.subr.mxu0 0.0
    %721 = vmatpush1.msra.mxu0 0.0
    %722 = vmatprep.subr.mxu0 0.0
    %723 = vmatpush1.msra.mxu0 0.0
    %724 = vmatprep.subr.mxu0 0.0
    %725 = vmatpush1.msra.mxu0 0.0
    %726 = vmatprep.subr.mxu0 0.0
    %727 = vmatpush1.msra.mxu0 0.0
    %728 = vmatprep.mubr.f32.mxu0 0.0
    %v729 = vand.u32 %v180, 4294901760
    %730 = vmatmul.mubr.f32.gmra.mrb[0].mxu0 %v729
    %v731 = vpop.f32.mrb[0].mxu0
    %v732 = vadd.f32 %v613, %v731
    %v733 = vpop.f32.mrb[0].mxu0
    %734 = vdwg.mxu0
    %735 = vmatprep.subr.mxu0 0.0
    %v736 = vand.u32 %v164, 4294901760
    %737 = vmatpush1.msra.mxu0 %v736
    %738 = vmatprep.subr.mxu0 0.0
    %v739 = vand.u32 %v165, 4294901760
    %740 = vmatpush1.msra.mxu0 %v739
    %741 = vmatprep.subr.mxu0 0.0
    %v742 = vand.u32 %v166, 4294901760
    %743 = vmatpush1.msra.mxu0 %v742
    %744 = vmatprep.subr.mxu0 0.0
    %v745 = vand.u32 %v167, 4294901760
    %746 = vmatpush1.msra.mxu0 %v745
    %747 = vmatprep.subr.mxu0 0.0
    %v748 = vand.u32 %v168, 4294901760
    %749 = vmatpush1.msra.mxu0 %v748
    %750 = vmatprep.subr.mxu0 0.0
    %v751 = vand.u32 %v169, 4294901760
    %752 = vmatpush1.msra.mxu0 %v751
    %753 = vmatprep.subr.mxu0 0.0
    %v754 = vand.u32 %v170, 4294901760
    %755 = vmatpush1.msra.mxu0 %v754
    %756 = vmatprep.subr.mxu0 0.0
    %v757 = vand.u32 %v171, 4294901760
    %758 = vmatpush1.msra.mxu0 %v757
    %759 = vmatprep.subr.mxu0 0.0
    %v760 = vand.u32 %v172, 4294901760
    %761 = vmatpush1.msra.mxu0 %v760
    %762 = vmatprep.subr.mxu0 0.0
    %v763 = vand.u32 %v173, 4294901760
    %764 = vmatpush1.msra.mxu0 %v763
    %765 = vmatprep.subr.mxu0 0.0
    %v766 = vand.u32 %v174, 4294901760
    %767 = vmatpush1.msra.mxu0 %v766
    %768 = vmatprep.subr.mxu0 0.0
    %v769 = vand.u32 %v175, 4294901760
    %770 = vmatpush1.msra.mxu0 %v769
    %771 = vmatprep.subr.mxu0 0.0
    %v772 = vand.u32 %v176, 4294901760
    %773 = vmatpush1.msra.mxu0 %v772
    %774 = vmatprep.subr.mxu0 0.0
    %v775 = vand.u32 %v177, 4294901760
    %776 = vmatpush1.msra.mxu0 %v775
    %777 = vmatprep.subr.mxu0 0.0
    %v778 = vand.u32 %v178, 4294901760
    %779 = vmatpush1.msra.mxu0 %v778
    %780 = vmatprep.subr.mxu0 0.0
    %v781 = vand.u32 %v179, 4294901760
    %782 = vmatpush1.msra.mxu0 %v781
    %783 = vmatprep.subr.mxu0 0.0
    %784 = vmatpush1.msra.mxu0 0.0
    %785 = vmatprep.subr.mxu0 0.0
    %786 = vmatpush1.msra.mxu0 0.0
    %787 = vmatprep.subr.mxu0 0.0
    %788 = vmatpush1.msra.mxu0 0.0
    %789 = vmatprep.subr.mxu0 0.0
    %790 = vmatpush1.msra.mxu0 0.0
    %791 = vmatprep.subr.mxu0 0.0
    %792 = vmatpush1.msra.mxu0 0.0
    %793 = vmatprep.subr.mxu0 0.0
    %794 = vmatpush1.msra.mxu0 0.0
    %795 = vmatprep.subr.mxu0 0.0
    %796 = vmatpush1.msra.mxu0 0.0
    %797 = vmatprep.subr.mxu0 0.0
    %798 = vmatpush1.msra.mxu0 0.0
    %799 = vmatprep.subr.mxu0 0.0
    %800 = vmatpush1.msra.mxu0 0.0
    %801 = vmatprep.subr.mxu0 0.0
    %802 = vmatpush1.msra.mxu0 0.0
    %803 = vmatprep.subr.mxu0 0.0
    %804 = vmatpush1.msra.mxu0 0.0
    %805 = vmatprep.subr.mxu0 0.0
    %806 = vmatpush1.msra.mxu0 0.0
    %807 = vmatprep.subr.mxu0 0.0
    %808 = vmatpush1.msra.mxu0 0.0
    %809 = vmatprep.subr.mxu0 0.0
    %810 = vmatpush1.msra.mxu0 0.0
    %811 = vmatprep.subr.mxu0 0.0
    %812 = vmatpush1.msra.mxu0 0.0
    %813 = vmatprep.subr.mxu0 0.0
    %814 = vmatpush1.msra.mxu0 0.0
    %815 = vmatprep.mubr.f32.mxu0 0.0
    %v816 = vand.u32 %v180, 4294901760
    %817 = vmatmul.mubr.f32.gmra.mrb[0].mxu0 %v816
    %v818 = vpop.f32.mrb[0].mxu0
    %v819 = vadd.f32 %v732, %v818
    %v820 = vpop.f32.mrb[0].mxu0
    %821 = vdwg.mxu0
    %v822 = vld [vmem:[%s3] sm:$0x1]
    %v823 = vld [vmem:[%s4] sm:$0x1]
    %v824 = vmul.f32 %v823, 0.01
    %v825 = vmul.f32 %v819, 0.007734375
    %v826 = vadd.f32 %v824, %v825
    %v827 = vld [vmem:[%s5] sm:$0x1]
    %v828 = vmul.f32 %v827, 0.01
    %v831 = vunpack.c.l.s4 1966171168
    %v832 = vunpack.c.0.s8 %v831
    %v833 = vlaneseq
    %v834 = vshrl.u32 %v833, 7
    %v835 = vsub.s32 %v832, %v834
    %v836 = vrot.slane %v825, %v835
    %v837 = vcombine.high %v836, %v836
    %v839 = vunpack.c.l.s4 1966171168
    %v840 = vunpack.c.0.s8 %v839
    %v841 = vlaneseq
    %v842 = vshrl.u32 %v841, 7
    %v843 = vsub.s32 %v840, %v842
    %v844 = vrot.slane %v837, %v843
    %v846 = vadd.f32 %v828, %v844
    %847 = vst [vmem:[#allocation2] sm:$0x1] %v826
    %848 = vst [vmem:[#allocation4] sm:$0x1] %v846
    %vm849 = vcmp.gt.f32.partialorder %v822, 0.0
    %v850 = vsel %vm849, %v826, 1.0
    %v851 = vrcp.pop %v850
    %v852 = vmul.f32 %v846, %v819
    %v855 = vunpack.c.l.s4 1966171168
    %v856 = vunpack.c.0.s8 %v855
    %v857 = vlaneseq
    %v858 = vshrl.u32 %v857, 7
    %v859 = vsub.s32 %v856, %v858
    %v860 = vrot.slane %v819, %v859
    %v861 = vcombine.high %v860, %v860
    %v863 = vunpack.c.l.s4 1966171168
    %v864 = vunpack.c.0.s8 %v863
    %v865 = vlaneseq
    %v866 = vshrl.u32 %v865, 7
    %v867 = vsub.s32 %v864, %v866
    %v868 = vrot.slane %v861, %v867
    %v870 = vmul.f32 %v826, %v868
    %v871 = vsub.f32 %v852, %v870
    %v872 = vmul.f32 %v822, %v871
    %v873 = vmul.f32 %v851, %v851
    %v874 = vmul.f32 %v872, %v873
    %875 = vst [vmem:[#allocation6] sm:$0x1] %v874
    // Predicated region
    $region26: #{tpu_custom_call.1} parent=1 // pred_check
      _
    $region27: #{tpu_custom_call.1} parent=1 // pred_check_branch
      %877 = sbr.rel (0) target = $region29
    $region28: #{tpu_custom_call.1} parent=1 // pred_region
      %s879 = ssub.s32 16, 16
      %880 = vsyncadd [#allocation3], %s879
      %s882 = sshll.u32 [#allocation2], 4
      %s883 = int_to_ptr.vmem [resolvable:$true] %s882
      %885 = dma.vmem_to_hbm [thread:$0]  %s883, 16, %s6, [#allocation3]
    $region29: #{tpu_custom_call.1} parent=1 // pred_fallthru
      _
    // Predicated region
    $region30: #{tpu_custom_call.1} parent=1 // pred_check
      _
    $region31: #{tpu_custom_call.1} parent=1 // pred_check_branch
      %887 = sbr.rel (0) target = $region33
    $region32: #{tpu_custom_call.1} parent=1 // pred_region
      %s889 = ssub.s32 16, 16
      %890 = vsyncadd [#allocation5], %s889
      %s892 = sshll.u32 [#allocation4], 4
      %s893 = int_to_ptr.vmem [resolvable:$true] %s892
      %895 = dma.vmem_to_hbm [thread:$0]  %s893, 16, %s7, [#allocation5]
    $region33: #{tpu_custom_call.1} parent=1 // pred_fallthru
      _
    // Predicated region
    $region34: #{tpu_custom_call.1} parent=1 // pred_check
      _
    $region35: #{tpu_custom_call.1} parent=1 // pred_check_branch
      %897 = sbr.rel (0) target = $region37
    $region36: #{tpu_custom_call.1} parent=1 // pred_region
      %s899 = ssub.s32 16, 16
      %900 = vsyncadd [#allocation5], %s899
      %s902 = sshll.u32 [#allocation6], 4
      %s903 = int_to_ptr.vmem [resolvable:$true] %s902
      %905 = dma.vmem_to_hbm [thread:$0]  %s903, 16, %s8, [#allocation5]
    $region37: #{tpu_custom_call.1} parent=1 // pred_fallthru
      _
    // Predicated region
    $region38: #{tpu_custom_call.1} parent=1 // pred_check
      _
    $region39: #{tpu_custom_call.1} parent=1 // pred_check_branch
      %907 = sbr.rel (0) target = $region41
    $region40: #{tpu_custom_call.1} parent=1 // pred_region
      %908 = dma.done [#allocation3], 16
    $region41: #{tpu_custom_call.1} parent=1 // pred_fallthru
      _
    // Predicated region
    $region42: #{tpu_custom_call.1} parent=1 // pred_check
      _
    $region43: #{tpu_custom_call.1} parent=1 // pred_check_branch
      %910 = sbr.rel (0) target = $region45
    $region44: #{tpu_custom_call.1} parent=1 // pred_region
      %911 = dma.done [#allocation5], 16
    $region45: #{tpu_custom_call.1} parent=1 // pred_fallthru
      _
    // Predicated region
    $region46: #{tpu_custom_call.1} parent=1 // pred_check
      _
    $region47: #{tpu_custom_call.1} parent=1 // pred_check_branch
      %913 = sbr.rel (0) target = $region49
    $region48: #{tpu_custom_call.1} parent=1 // pred_region
      %914 = dma.done [#allocation5], 16
    $region49: #{tpu_custom_call.1} parent=1 // pred_fallthru
      _
    %915 = vsyncpa [#allocation3], 1
    %916 = vsyncpa [#allocation5], 1

</llo_original>
